<compile_context>
chip_gen: v6e
topology: v6e:2x2x1
jax: 0.10.0
libtpu: 0.0.40
codegen_flags: <defaults>
</compile_context>

<pallas_src>
import jax
import jax.numpy as jnp
from jax import lax
from jax.experimental import pallas as pl
from jax.experimental.pallas import tpu as pltpu


def _cdiv(a, b):
    return -(-a // b)


def _round_up(a, b):
    return _cdiv(a, b) * b


def mlp_kernel(x_ref, w1t_ref, b1_ref, w2_ref, b2_ref, o_ref):
    # x:   (TB, D)          streamed batch tile (rows = batch)
    # w1t: (H, D)           resident first-layer weights, transposed
    # b1:  (H, 1)  w2: (H, 1)   resident
    # b2:  (1, 1)  in SMEM
    # o:   (TB // CH, CH)   lane-dense output; row c holds batch chunk c
    H = w1t_ref.shape[0]
    n_chunks, CH = o_ref.shape

    w1t = w1t_ref[...]
    # Hoist lane-broadcasts out of the chunk loop (JAX does not CSE
    # broadcast_in_dim; these are loop-invariant).
    b1b = jnp.broadcast_to(b1_ref[...], (H, CH))
    w2b = jnp.broadcast_to(w2_ref[...], (H, CH))
    b2 = b2_ref[0, 0]                       # scalar from SMEM

    @pl.loop(0, n_chunks)
    def _(c):
        r0 = pl.multiple_of(c * CH, CH)
        x_chunk = x_ref[pl.ds(r0, CH), :]                    # (CH, D)

        # First layer, transposed: h_t[h, b] = sum_d w1t[h, d] * x[b, d].
        # Contracting the minor dim of both operands keeps batch on LANES so
        # the final per-row scalar lands lane-dense.
        # NOTE: if a v7x bundle audit shows an XLU relayout of x_chunk here,
        # flip to x @ w1 and restage the column result instead.
        h_t = lax.dot_general(
            w1t, x_chunk,
            dimension_numbers=(((1,), (1,)), ((), ())),
            preferred_element_type=jnp.float32,
        )                                                    # (H, CH)
        h_t = jnp.maximum(h_t + b1b, 0.0)                    # bias + ReLU (VPU)

        # Second layer (out_features == 1): VPU multiply + sublane reduce,
        # result already lane-dense (1, CH).
        row = jnp.sum(h_t * w2b, axis=0, keepdims=True) + b2
        o_ref[pl.ds(c, 1), :] = row.astype(o_ref.dtype)


def mlp_forward(x, w1, b1, w2, b2, *, vmem_budget_bytes=16 * 2**20, chunk=512):
    """x: (B, D) f32; w1: (D, H); b1: (H,); w2: (H, 1); b2: (1,). Returns (B,)."""
    B, D = x.shape
    H = w1.shape[1]
    CH = chunk
    ALIGN = 8 * CH      # keeps the output block's sublane dim a multiple of 8

    # VMEM-budgeted batch tile: per-row bytes = double-buffered x (2*D*4) plus
    # double-buffered output (2*4); chunk intermediates are O(CH), not O(tb).
    bytes_per_row = (2 * D + 2) * 4
    tb = max(ALIGN, (vmem_budget_bytes // bytes_per_row) // ALIGN * ALIGN)

    # v7x megacore: keep at least 2 batch tiles when the batch is big enough
    # to split, so the "parallel" axis actually shards across both TCs.
    if B > 2 * ALIGN:
        tb = min(tb, _round_up(_cdiv(B, 2), ALIGN))

    if B <= tb:
        # Single tile: just cover B (chunk-aligned); block dims equal full dims.
        tb = _round_up(B, CH)
    grid = _cdiv(B, tb)                  # ragged last x block handled by Pallas
    rows_per_tile = tb // CH
    n_rows = grid * rows_per_tile

    w1t = jnp.transpose(w1).astype(jnp.float32)   # (H, D): tiny, one-time
    b1c = b1.reshape(H, 1).astype(jnp.float32)
    w2c = w2.reshape(H, 1).astype(jnp.float32)
    b2c = b2.reshape(1, 1).astype(jnp.float32)

    out = pl.pallas_call(
        mlp_kernel,
        out_shape=jax.ShapeDtypeStruct((n_rows, CH), jnp.float32),
        grid_spec=pl.GridSpec(
            grid=(grid,),
            in_specs=[
                pl.BlockSpec((tb, D), lambda i: (i, 0)),     # x: streamed tiles
                pl.BlockSpec((H, D), lambda i: (0, 0)),      # w1^T: resident
                pl.BlockSpec((H, 1), lambda i: (0, 0)),      # b1
                pl.BlockSpec((H, 1), lambda i: (0, 0)),      # w2
                pl.BlockSpec(memory_space=pltpu.MemorySpace.SMEM),  # b2 scalar
            ],
            out_specs=pl.BlockSpec((rows_per_tile, CH), lambda i: (i, 0)),
        ),
        compiler_params=pltpu.CompilerParams(
            dimension_semantics=("parallel",),
            vmem_limit_bytes=int(32 * 2**20),
        ),
    )(x, w1t, b1c, w2c, b2c)

    # Row-major flatten: row r, lane l  ->  batch index r*CH + l.
    return out.reshape(-1)[:B]           # matches PyTorch .squeeze(1) -> (B,)


def mlp_reference(x, w1, b1, w2, b2):
    h = jnp.maximum(x @ w1 + b1[None, :], 0.0)
    return (h @ w2 + b2[None, :]).squeeze(1)


def init_params(key, input_dim, hidden=64):
    # Deterministic init mimicking PyTorch's default U(-1/sqrt(fan_in), ...)
    k1, k2, k3, k4 = jax.random.split(key, 4)
    lim1 = 1.0 / jnp.sqrt(jnp.float32(input_dim))
    lim2 = 1.0 / jnp.sqrt(jnp.float32(hidden))
    w1 = jax.random.uniform(k1, (input_dim, hidden), jnp.float32, -lim1, lim1)
    b1 = jax.random.uniform(k2, (hidden,), jnp.float32, -lim1, lim1)
    w2 = jax.random.uniform(k3, (hidden, 1), jnp.float32, -lim2, lim2)
    b2 = jax.random.uniform(k4, (1,), jnp.float32, -lim2, lim2)
    return w1, b1, w2, b2


def mse_loss(pred, target):
    # Equivalent of Module.cal_loss (nn.MSELoss(reduction='mean')), plain JAX glue.
    return jnp.mean((pred - target) ** 2)


if __name__ == "__main__":
    key = jax.random.PRNGKey(0)
    k_x, k_p, k_t, k_x2 = jax.random.split(key, 4)

    batch, input_dim = 8, 32
    x = jax.random.normal(k_x, (batch, input_dim), jnp.float32)
    w1, b1, w2, b2 = init_params(k_p, input_dim)

    pred = mlp_forward(x, w1, b1, w2, b2)
    jax.block_until_ready(pred)
    ref = mlp_reference(x, w1, b1, w2, b2)
    assert pred.shape == (batch,)
    assert jnp.allclose(pred, ref, atol=1e-4, rtol=1e-4)

    # Exercise the multi-tile (grid=2), ragged-last-block, multi-chunk path by
    # forcing a small VMEM budget (tb=4096, chunks of 512).
    batch2 = 5000
    x2 = jax.random.normal(k_x2, (batch2, input_dim), jnp.float32)
    pred2 = mlp_forward(x2, w1, b1, w2, b2, vmem_budget_bytes=2 * 2**20)
    jax.block_until_ready(pred2)
    ref2 = mlp_reference(x2, w1, b1, w2, b2)
    assert pred2.shape == (batch2,)
    assert jnp.allclose(pred2, ref2, atol=1e-4, rtol=1e-4)

    target = jax.random.normal(k_t, (batch,), jnp.float32)
    loss = mse_loss(pred, target)
    jax.block_until_ready(loss)

    print("KERNEL_OK")
</pallas_src>

<mosaic_0001>
module attributes {stable_mosaic.version = 11 : i64} {
  func.func @mlp_kernel(%arg0: i32, %arg1: memref<512x32xf32, #tpu.memory_space<vmem>>, %arg2: memref<64x32xf32, #tpu.memory_space<vmem>>, %arg3: memref<64x1xf32, #tpu.memory_space<vmem>>, %arg4: memref<64x1xf32, #tpu.memory_space<vmem>>, %arg5: memref<1x1xf32, #tpu.memory_space<smem>>, %arg6: memref<1x512xf32, #tpu.memory_space<vmem>>) attributes {dimension_semantics = [#tpu.dimension_semantics<parallel>], iteration_bounds = array<i64: 1>, scalar_prefetch = 0 : i64, scratch_operands = 0 : i64, tpu.core_type = #tpu.core_type<tc>, window_params = [{transform_indices = @transform_0, window_bounds = array<i64: 512, 32>}, {pipeline_mode = #tpu.pipeline_mode<synchronous>, transform_indices = @transform_1, window_bounds = array<i64: 64, 32>}, {pipeline_mode = #tpu.pipeline_mode<synchronous>, transform_indices = @transform_2, window_bounds = array<i64: 64, 1>}, {pipeline_mode = #tpu.pipeline_mode<synchronous>, transform_indices = @transform_3, window_bounds = array<i64: 64, 1>}, {transform_indices = @transform_4, window_bounds = array<i64: 1, 1>}, {transform_indices = @transform_5, window_bounds = array<i64: 1, 512>}]} {
    %c0 = arith.constant 0 : index
    %c0_0 = arith.constant 0 : index
    %0 = vector.load %arg2[%c0, %c0_0] : memref<64x32xf32, #tpu.memory_space<vmem>>, vector<64x32xf32>
    %c0_1 = arith.constant 0 : index
    %c0_2 = arith.constant 0 : index
    %1 = vector.load %arg3[%c0_1, %c0_2] : memref<64x1xf32, #tpu.memory_space<vmem>>, vector<64x1xf32>
    %2 = vector.shape_cast %1 : vector<64x1xf32> to vector<64x1xf32>
    %3 = vector.broadcast %2 : vector<64x1xf32> to vector<64x512xf32>
    %c0_3 = arith.constant 0 : index
    %c0_4 = arith.constant 0 : index
    %4 = vector.load %arg4[%c0_3, %c0_4] : memref<64x1xf32, #tpu.memory_space<vmem>>, vector<64x1xf32>
    %5 = vector.shape_cast %4 : vector<64x1xf32> to vector<64x1xf32>
    %6 = vector.broadcast %5 : vector<64x1xf32> to vector<64x512xf32>
    %c0_5 = arith.constant 0 : index
    %c0_6 = arith.constant 0 : index
    %7 = memref.load %arg5[%c0_5, %c0_6] : memref<1x1xf32, #tpu.memory_space<smem>>
    %c0_i32 = arith.constant 0 : i32
    %c1_i32 = arith.constant 1 : i32
    %8 = arith.muli %c0_i32, %c1_i32 : i32
    %c0_i32_7 = arith.constant 0 : i32
    %9 = arith.addi %c0_i32_7, %8 : i32
    %c512_i32 = arith.constant 512 : i32
    %10 = arith.muli %9, %c512_i32 : i32
    %11 = tpu.assume_multiple %10, 512 : i32
    %12 = arith.index_cast %11 : i32 to index
    %c0_8 = arith.constant 0 : index
    %13 = vector.load %arg1[%12, %c0_8] : memref<512x32xf32, #tpu.memory_space<vmem>>, vector<512x32xf32>
    %cst = arith.constant dense<0.000000e+00> : vector<64x512xf32>
    %14 = tpu.matmul %0, %13, %cst {dimension_numbers = #tpu.dot_dimension_numbers<[1], [1], [0], [0], [0, 0, 1, 0], [], []>} : vector<64x32xf32>, vector<512x32xf32>, vector<64x512xf32> -> vector<64x512xf32>
    %15 = arith.addf %14, %3 : vector<64x512xf32>
    %cst_9 = arith.constant 0.000000e+00 : f32
    %16 = vector.broadcast %cst_9 : f32 to vector<64x512xf32>
    %17 = arith.maximumf %15, %16 : vector<64x512xf32>
    %18 = arith.mulf %17, %6 : vector<64x512xf32>
    %cst_10 = arith.constant dense<0.000000e+00> : vector<512xf32>
    %19 = vector.multi_reduction <add>, %18, %cst_10 [0] : vector<64x512xf32> to vector<512xf32>
    %20 = vector.shape_cast %19 : vector<512xf32> to vector<1x512xf32>
    %21 = vector.broadcast %7 : f32 to vector<1x512xf32>
    %22 = arith.addf %20, %21 : vector<1x512xf32>
    %23 = arith.index_cast %9 : i32 to index
    %c0_11 = arith.constant 0 : index
    %24 = vector.load %arg6[%23, %c0_11] : memref<1x512xf32, #tpu.memory_space<vmem>>, vector<1x512xf32>
    tpu.vector_store %arg6[%23, %c0_11], %22 {strides = array<i32>} : memref<1x512xf32, #tpu.memory_space<vmem>>, vector<1x512xf32>,
    %c1_i32_12 = arith.constant 1 : i32
    return
  }
  func.func @transform_0(%arg0: i32) -> (i32, i32) {
    %c0_i32 = arith.constant 0 : i32
    %c0_i32_0 = arith.constant 0 : i32
    return %arg0, %c0_i32 : i32, i32
  }
  func.func @transform_1(%arg0: i32) -> (i32, i32) {
    %c0_i32 = arith.constant 0 : i32
    %c0_i32_0 = arith.constant 0 : i32
    %c0_i32_1 = arith.constant 0 : i32
    return %c0_i32, %c0_i32_0 : i32, i32
  }
  func.func @transform_2(%arg0: i32) -> (i32, i32) {
    %c0_i32 = arith.constant 0 : i32
    %c0_i32_0 = arith.constant 0 : i32
    %c0_i32_1 = arith.constant 0 : i32
    return %c0_i32, %c0_i32_0 : i32, i32
  }
  func.func @transform_3(%arg0: i32) -> (i32, i32) {
    %c0_i32 = arith.constant 0 : i32
    %c0_i32_0 = arith.constant 0 : i32
    %c0_i32_1 = arith.constant 0 : i32
    return %c0_i32, %c0_i32_0 : i32, i32
  }
  func.func @transform_4(%arg0: i32) -> (i32, i32) {
    %c0_i32 = arith.constant 0 : i32
    %c0_i32_0 = arith.constant 0 : i32
    %c0_i32_1 = arith.constant 0 : i32
    return %c0_i32, %c0_i32_0 : i32, i32
  }
  func.func @transform_5(%arg0: i32) -> (i32, i32) {
    %c0_i32 = arith.constant 0 : i32
    %c0_i32_0 = arith.constant 0 : i32
    return %arg0, %c0_i32 : i32, i32
  }
}

</mosaic_0001>

<llo_original>
// kernel: tpu_custom_call.1
$region0: #{tpu_custom_call.1}
  #allocation0 [shape = 'u32[]', space=smem, size = 0x4, offset = 0x4, fixed_abs, tag = 'smem constant byte address 0x4 - core index']
  #allocation1 [shape = 'u32[144,128]{1,0:T(1,128)}', space=vmem, size = 0x12000, scoped, tag = 'internal scratch']
  #allocation2 [shape = 'f32[1,1]{1,0:T(1,128)S(6)}', space=smem, size = 0x200, scoped, tag = 'scoped memory for tpu_custom_call.1']
  %s0 = inlined_call_operand.vmem [shape: f32[8,32], index: 0, kind: input, shape index: {}]
  %s1 = inlined_call_operand.vmem [shape: f32[64,32], index: 1, kind: input, shape index: {}]
  %s2 = inlined_call_operand.vmem [shape: f32[64,1], index: 2, kind: input, shape index: {}]
  %s3 = inlined_call_operand.vmem [shape: f32[64,1], index: 3, kind: input, shape index: {}]
  %s4 = inlined_call_operand.<no memory space> [shape: f32[1,1], index: 4, kind: input, shape index: {}]
  %s5 = inlined_call_operand.hbm [shape: f32[1,512], index: 5, kind: output, shape index: {}]
  %s6 = sld [smem:[#allocation0]]
  $region30: #{tpu_custom_call.1} parent=0
    _
  %s8 = ssub.s32 1, %s6
  %s9 = scalar_select 0, %s8, %s6
  %10 = sst [smem:[#allocation2]] %s4
  $region1: #{tpu_custom_call.1} parent=0
    #allocation3 [shape = 'u8[2048]{0}', space=vmem, size = 0x800, scoped, tag = 'output window, operand 0, single buffered']
    #allocation4 [shape = 's32[1]{0}', space=sflag, size = 0x4, scoped, tag = 'scoped memory for tpu_custom_call.1']
    %11 = vsyncpa [#allocation4], 0
    // Predicated region
    $region2: #{tpu_custom_call.1} parent=1 // pred_check
      _
    $region3: #{tpu_custom_call.1} parent=1 // pred_check_branch
      %13 = sbr.rel (0) target = $region5
    $region4: #{tpu_custom_call.1} parent=1 // pred_region
      _
    $region5: #{tpu_custom_call.1} parent=1 // pred_fallthru
      _
    // Predicated region
    $region6: #{tpu_custom_call.1} parent=1 // pred_check
      _
    $region7: #{tpu_custom_call.1} parent=1 // pred_check_branch
      %15 = sbr.rel (0) target = $region9
    $region8: #{tpu_custom_call.1} parent=1 // pred_region
      _
    $region9: #{tpu_custom_call.1} parent=1 // pred_fallthru
      _
    // Predicated region
    $region10: #{tpu_custom_call.1} parent=1 // pred_check
      _
    $region11: #{tpu_custom_call.1} parent=1 // pred_check_branch
      %17 = sbr.rel (0) target = $region13
    $region12: #{tpu_custom_call.1} parent=1 // pred_region
      _
    $region13: #{tpu_custom_call.1} parent=1 // pred_fallthru
      _
    // Predicated region
    $region14: #{tpu_custom_call.1} parent=1 // pred_check
      _
    $region15: #{tpu_custom_call.1} parent=1 // pred_check_branch
      %19 = sbr.rel (0) target = $region17
    $region16: #{tpu_custom_call.1} parent=1 // pred_region
      _
    $region17: #{tpu_custom_call.1} parent=1 // pred_fallthru
      _
    // Predicated region
    $region18: #{tpu_custom_call.1} parent=1 // pred_check
      _
    $region19: #{tpu_custom_call.1} parent=1 // pred_check_branch
      %21 = sbr.rel (0) target = $region21
    $region20: #{tpu_custom_call.1} parent=1 // pred_region
      _
    $region21: #{tpu_custom_call.1} parent=1 // pred_fallthru
      _
    %v22 = vld [vmem:[%s1] sm:$0xff]
    %v23 = vld [vmem:[%s1 + $0x8] sm:$0xff]
    %v24 = vld [vmem:[%s1 + $0x10] sm:$0xff]
    %v25 = vld [vmem:[%s1 + $0x18] sm:$0xff]
    %v26 = vld [vmem:[%s1 + $0x20] sm:$0xff]
    %v27 = vld [vmem:[%s1 + $0x28] sm:$0xff]
    %v28 = vld [vmem:[%s1 + $0x30] sm:$0xff]
    %v29 = vld [vmem:[%s1 + $0x38] sm:$0xff]
    %v30 = vld [vmem:[%s2] sm:$0xff]
    %v31 = vld [vmem:[%s2 + $0x8] sm:$0xff]
    %v32 = vld [vmem:[%s2 + $0x10] sm:$0xff]
    %v33 = vld [vmem:[%s2 + $0x18] sm:$0xff]
    %v34 = vld [vmem:[%s2 + $0x20] sm:$0xff]
    %v35 = vld [vmem:[%s2 + $0x28] sm:$0xff]
    %v36 = vld [vmem:[%s2 + $0x30] sm:$0xff]
    %v37 = vld [vmem:[%s2 + $0x38] sm:$0xff]
    %39 = vset.pattern.permute.xlu0 0
    %40 = vperm.xlu0 %39, %v30
    %v41 = vpop.permute.xlu0 %40
    %44 = vset.pattern.permute.xlu0 0
    %45 = vperm.xlu0 %44, %v31
    %v46 = vpop.permute.xlu0 %45
    %49 = vset.pattern.permute.xlu0 0
    %50 = vperm.xlu0 %49, %v32
    %v51 = vpop.permute.xlu0 %50
    %54 = vset.pattern.permute.xlu0 0
    %55 = vperm.xlu0 %54, %v33
    %v56 = vpop.permute.xlu0 %55
    %59 = vset.pattern.permute.xlu0 0
    %60 = vperm.xlu0 %59, %v34
    %v61 = vpop.permute.xlu0 %60
    %64 = vset.pattern.permute.xlu0 0
    %65 = vperm.xlu0 %64, %v35
    %v66 = vpop.permute.xlu0 %65
    %69 = vset.pattern.permute.xlu0 0
    %70 = vperm.xlu0 %69, %v36
    %v71 = vpop.permute.xlu0 %70
    %74 = vset.pattern.permute.xlu0 0
    %75 = vperm.xlu0 %74, %v37
    %v76 = vpop.permute.xlu0 %75
    %v78 = vld [vmem:[%s3] sm:$0xff]
    %v79 = vld [vmem:[%s3 + $0x8] sm:$0xff]
    %v80 = vld [vmem:[%s3 + $0x10] sm:$0xff]
    %v81 = vld [vmem:[%s3 + $0x18] sm:$0xff]
    %v82 = vld [vmem:[%s3 + $0x20] sm:$0xff]
    %v83 = vld [vmem:[%s3 + $0x28] sm:$0xff]
    %v84 = vld [vmem:[%s3 + $0x30] sm:$0xff]
    %v85 = vld [vmem:[%s3 + $0x38] sm:$0xff]
    %87 = vset.pattern.permute.xlu0 0
    %88 = vperm.xlu0 %87, %v78
    %v89 = vpop.permute.xlu0 %88
    %92 = vset.pattern.permute.xlu0 0
    %93 = vperm.xlu0 %92, %v79
    %v94 = vpop.permute.xlu0 %93
    %97 = vset.pattern.permute.xlu0 0
    %98 = vperm.xlu0 %97, %v80
    %v99 = vpop.permute.xlu0 %98
    %102 = vset.pattern.permute.xlu0 0
    %103 = vperm.xlu0 %102, %v81
    %v104 = vpop.permute.xlu0 %103
    %107 = vset.pattern.permute.xlu0 0
    %108 = vperm.xlu0 %107, %v82
    %v109 = vpop.permute.xlu0 %108
    %112 = vset.pattern.permute.xlu0 0
    %113 = vperm.xlu0 %112, %v83
    %v114 = vpop.permute.xlu0 %113
    %117 = vset.pattern.permute.xlu0 0
    %118 = vperm.xlu0 %117, %v84
    %v119 = vpop.permute.xlu0 %118
    %122 = vset.pattern.permute.xlu0 0
    %123 = vperm.xlu0 %122, %v85
    %v124 = vpop.permute.xlu0 %123
    %s126 = sld [smem:[#allocation2]]
    %v127 = vld [vmem:[%s0] sm:$0xff]
    %v128 = vld [vmem:[%s0 + $0x8] sm:$0xff]
    %v129 = vld [vmem:[%s0 + $0x10] sm:$0xff]
    %v130 = vld [vmem:[%s0 + $0x18] sm:$0xff]
    %v131 = vld [vmem:[%s0 + $0x20] sm:$0xff]
    %v132 = vld [vmem:[%s0 + $0x28] sm:$0xff]
    %v133 = vld [vmem:[%s0 + $0x30] sm:$0xff]
    %v134 = vld [vmem:[%s0 + $0x38] sm:$0xff]
    %v135 = vld [vmem:[%s0 + $0x40] sm:$0xff]
    %v136 = vld [vmem:[%s0 + $0x48] sm:$0xff]
    %v137 = vld [vmem:[%s0 + $0x50] sm:$0xff]
    %v138 = vld [vmem:[%s0 + $0x58] sm:$0xff]
    %v139 = vld [vmem:[%s0 + $0x60] sm:$0xff]
    %v140 = vld [vmem:[%s0 + $0x68] sm:$0xff]
    %v141 = vld [vmem:[%s0 + $0x70] sm:$0xff]
    %v142 = vld [vmem:[%s0 + $0x78] sm:$0xff]
    %v143 = vld [vmem:[%s0 + $0x80] sm:$0xff]
    %v144 = vld [vmem:[%s0 + $0x88] sm:$0xff]
    %v145 = vld [vmem:[%s0 + $0x90] sm:$0xff]
    %v146 = vld [vmem:[%s0 + $0x98] sm:$0xff]
    %v147 = vld [vmem:[%s0 + $0xa0] sm:$0xff]
    %v148 = vld [vmem:[%s0 + $0xa8] sm:$0xff]
    %v149 = vld [vmem:[%s0 + $0xb0] sm:$0xff]
    %v150 = vld [vmem:[%s0 + $0xb8] sm:$0xff]
    %v151 = vld [vmem:[%s0 + $0xc0] sm:$0xff]
    %v152 = vld [vmem:[%s0 + $0xc8] sm:$0xff]
    %v153 = vld [vmem:[%s0 + $0xd0] sm:$0xff]
    %v154 = vld [vmem:[%s0 + $0xd8] sm:$0xff]
    %v155 = vld [vmem:[%s0 + $0xe0] sm:$0xff]
    %v156 = vld [vmem:[%s0 + $0xe8] sm:$0xff]
    %v157 = vld [vmem:[%s0 + $0xf0] sm:$0xff]
    %v158 = vld [vmem:[%s0 + $0xf8] sm:$0xff]
    %v159 = vld [vmem:[%s0 + $0x100] sm:$0xff]
    %v160 = vld [vmem:[%s0 + $0x108] sm:$0xff]
    %v161 = vld [vmem:[%s0 + $0x110] sm:$0xff]
    %v162 = vld [vmem:[%s0 + $0x118] sm:$0xff]
    %v163 = vld [vmem:[%s0 + $0x120] sm:$0xff]
    %v164 = vld [vmem:[%s0 + $0x128] sm:$0xff]
    %v165 = vld [vmem:[%s0 + $0x130] sm:$0xff]
    %v166 = vld [vmem:[%s0 + $0x138] sm:$0xff]
    %v167 = vld [vmem:[%s0 + $0x140] sm:$0xff]
    %v168 = vld [vmem:[%s0 + $0x148] sm:$0xff]
    %v169 = vld [vmem:[%s0 + $0x150] sm:$0xff]
    %v170 = vld [vmem:[%s0 + $0x158] sm:$0xff]
    %v171 = vld [vmem:[%s0 + $0x160] sm:$0xff]
    %v172 = vld [vmem:[%s0 + $0x168] sm:$0xff]
    %v173 = vld [vmem:[%s0 + $0x170] sm:$0xff]
    %v174 = vld [vmem:[%s0 + $0x178] sm:$0xff]
    %v175 = vld [vmem:[%s0 + $0x180] sm:$0xff]
    %v176 = vld [vmem:[%s0 + $0x188] sm:$0xff]
    %v177 = vld [vmem:[%s0 + $0x190] sm:$0xff]
    %v178 = vld [vmem:[%s0 + $0x198] sm:$0xff]
    %v179 = vld [vmem:[%s0 + $0x1a0] sm:$0xff]
    %v180 = vld [vmem:[%s0 + $0x1a8] sm:$0xff]
    %v181 = vld [vmem:[%s0 + $0x1b0] sm:$0xff]
    %v182 = vld [vmem:[%s0 + $0x1b8] sm:$0xff]
    %v183 = vld [vmem:[%s0 + $0x1c0] sm:$0xff]
    %v184 = vld [vmem:[%s0 + $0x1c8] sm:$0xff]
    %v185 = vld [vmem:[%s0 + $0x1d0] sm:$0xff]
    %v186 = vld [vmem:[%s0 + $0x1d8] sm:$0xff]
    %v187 = vld [vmem:[%s0 + $0x1e0] sm:$0xff]
    %v188 = vld [vmem:[%s0 + $0x1e8] sm:$0xff]
    %v189 = vld [vmem:[%s0 + $0x1f0] sm:$0xff]
    %v190 = vld [vmem:[%s0 + $0x1f8] sm:$0xff]
    %vm191 = vcmask 261120
    %v193 = vsel %vm191, %v22, 0
    %v196 = vsel %vm191, %v23, 0
    %v199 = vsel %vm191, %v24, 0
    %v202 = vsel %vm191, %v25, 0
    %v205 = vsel %vm191, %v26, 0
    %v208 = vsel %vm191, %v27, 0
    %v211 = vsel %vm191, %v28, 0
    %v214 = vsel %vm191, %v29, 0
    %v217 = vsel %vm191, %v127, 0
    %v220 = vsel %vm191, %v128, 0
    %v223 = vsel %vm191, %v129, 0
    %v226 = vsel %vm191, %v130, 0
    %v229 = vsel %vm191, %v131, 0
    %v232 = vsel %vm191, %v132, 0
    %v235 = vsel %vm191, %v133, 0
    %v238 = vsel %vm191, %v134, 0
    %v241 = vsel %vm191, %v135, 0
    %v244 = vsel %vm191, %v136, 0
    %v247 = vsel %vm191, %v137, 0
    %v250 = vsel %vm191, %v138, 0
    %v253 = vsel %vm191, %v139, 0
    %v256 = vsel %vm191, %v140, 0
    %v259 = vsel %vm191, %v141, 0
    %v262 = vsel %vm191, %v142, 0
    %v265 = vsel %vm191, %v143, 0
    %v268 = vsel %vm191, %v144, 0
    %v271 = vsel %vm191, %v145, 0
    %v274 = vsel %vm191, %v146, 0
    %v277 = vsel %vm191, %v147, 0
    %v280 = vsel %vm191, %v148, 0
    %v283 = vsel %vm191, %v149, 0
    %v286 = vsel %vm191, %v150, 0
    %v289 = vsel %vm191, %v151, 0
    %v292 = vsel %vm191, %v152, 0
    %v295 = vsel %vm191, %v153, 0
    %v298 = vsel %vm191, %v154, 0
    %v301 = vsel %vm191, %v155, 0
    %v304 = vsel %vm191, %v156, 0
    %v307 = vsel %vm191, %v157, 0
    %v310 = vsel %vm191, %v158, 0
    %v313 = vsel %vm191, %v159, 0
    %v316 = vsel %vm191, %v160, 0
    %v319 = vsel %vm191, %v161, 0
    %v322 = vsel %vm191, %v162, 0
    %v325 = vsel %vm191, %v163, 0
    %v328 = vsel %vm191, %v164, 0
    %v331 = vsel %vm191, %v165, 0
    %v334 = vsel %vm191, %v166, 0
    %v337 = vsel %vm191, %v167, 0
    %v340 = vsel %vm191, %v168, 0
    %v343 = vsel %vm191, %v169, 0
    %v346 = vsel %vm191, %v170, 0
    %v349 = vsel %vm191, %v171, 0
    %v352 = vsel %vm191, %v172, 0
    %v355 = vsel %vm191, %v173, 0
    %v358 = vsel %vm191, %v174, 0
    %v361 = vsel %vm191, %v175, 0
    %v364 = vsel %vm191, %v176, 0
    %v367 = vsel %vm191, %v177, 0
    %v370 = vsel %vm191, %v178, 0
    %v373 = vsel %vm191, %v179, 0
    %v376 = vsel %vm191, %v180, 0
    %v379 = vsel %vm191, %v181, 0
    %v382 = vsel %vm191, %v182, 0
    %v385 = vsel %vm191, %v183, 0
    %v388 = vsel %vm191, %v184, 0
    %v391 = vsel %vm191, %v185, 0
    %v394 = vsel %vm191, %v186, 0
    %v397 = vsel %vm191, %v187, 0
    %v400 = vsel %vm191, %v188, 0
    %v403 = vsel %vm191, %v189, 0
    %v406 = vsel %vm191, %v190, 0
    %408 = vmatprep.subr.mxu0 0.0
    %409 = vmatpush1.xpose.msra.mxu0 %v262
    %410 = vmatprep.subr.mxu0 0.0
    %411 = vmatpush1.xpose.msra.mxu0 %v259
    %412 = vmatprep.subr.mxu0 0.0
    %413 = vmatpush1.xpose.msra.mxu0 %v256
    %414 = vmatprep.subr.mxu0 0.0
    %415 = vmatpush1.xpose.msra.mxu0 %v253
    %416 = vmatprep.subr.mxu0 0.0
    %417 = vmatpush1.xpose.msra.mxu0 %v250
    %418 = vmatprep.subr.mxu0 0.0
    %419 = vmatpush1.xpose.msra.mxu0 %v247
    %420 = vmatprep.subr.mxu0 0.0
    %421 = vmatpush1.xpose.msra.mxu0 %v244
    %422 = vmatprep.subr.mxu0 0.0
    %423 = vmatpush1.xpose.msra.mxu0 %v241
    %424 = vmatprep.subr.mxu0 0.0
    %425 = vmatpush1.xpose.msra.mxu0 %v238
    %426 = vmatprep.subr.mxu0 0.0
    %427 = vmatpush1.xpose.msra.mxu0 %v235
    %428 = vmatprep.subr.mxu0 0.0
    %429 = vmatpush1.xpose.msra.mxu0 %v232
    %430 = vmatprep.subr.mxu0 0.0
    %431 = vmatpush1.xpose.msra.mxu0 %v229
    %432 = vmatprep.subr.mxu0 0.0
    %433 = vmatpush1.xpose.msra.mxu0 %v226
    %434 = vmatprep.subr.mxu0 0.0
    %435 = vmatpush1.xpose.msra.mxu0 %v223
    %436 = vmatprep.subr.mxu0 0.0
    %437 = vmatpush1.xpose.msra.mxu0 %v220
    %438 = vmatprep.subr.mxu0 0.0
    %439 = vmatpush1.xpose.msra.mxu0 %v217
    %440 = vmatprep.subr.mxu0 0.0
    %441 = vmatpush2.xpose.msra.mxu0 %v310
    %442 = vmatprep.subr.mxu0 0.0
    %443 = vmatpush2.xpose.msra.mxu0 %v307
    %444 = vmatprep.subr.mxu0 0.0
    %445 = vmatpush2.xpose.msra.mxu0 %v304
    %446 = vmatprep.subr.mxu0 0.0
    %447 = vmatpush2.xpose.msra.mxu0 %v301
    %448 = vmatprep.subr.mxu0 0.0
    %449 = vmatpush2.xpose.msra.mxu0 %v298
    %450 = vmatprep.subr.mxu0 0.0
    %451 = vmatpush2.xpose.msra.mxu0 %v295
    %452 = vmatprep.subr.mxu0 0.0
    %453 = vmatpush2.xpose.msra.mxu0 %v292
    %454 = vmatprep.subr.mxu0 0.0
    %455 = vmatpush2.xpose.msra.mxu0 %v289
    %456 = vmatprep.subr.mxu0 0.0
    %457 = vmatpush2.xpose.msra.mxu0 %v286
    %458 = vmatprep.subr.mxu0 0.0
    %459 = vmatpush2.xpose.msra.mxu0 %v283
    %460 = vmatprep.subr.mxu0 0.0
    %461 = vmatpush2.xpose.msra.mxu0 %v280
    %462 = vmatprep.subr.mxu0 0.0
    %463 = vmatpush2.xpose.msra.mxu0 %v277
    %464 = vmatprep.subr.mxu0 0.0
    %465 = vmatpush2.xpose.msra.mxu0 %v274
    %466 = vmatprep.subr.mxu0 0.0
    %467 = vmatpush2.xpose.msra.mxu0 %v271
    %468 = vmatprep.subr.mxu0 0.0
    %469 = vmatpush2.xpose.msra.mxu0 %v268
    %470 = vmatprep.subr.mxu0 0.0
    %471 = vmatpush2.xpose.msra.mxu0 %v265
    %472 = vmatprep.mubr.f32.mxu0 0.0
    %473 = vmatmul.mubr.f32.gmra.mxu0 %v193
    %v474 = vpop.f32.mrf.mxu0
    %v475 = vadd.f32 %v41, %v474
    %v476 = vpop.f32.mrf.mxu0
    %v477 = vadd.f32 %v41, %v476
    %478 = vmatprep.mubr.f32.mxu0 0.0
    %479 = vmatmul.mubr.f32.gmra.mxu0 %v196
    %v480 = vpop.f32.mrf.mxu0
    %v481 = vadd.f32 %v46, %v480
    %v482 = vpop.f32.mrf.mxu0
    %v483 = vadd.f32 %v46, %v482
    %484 = vmatprep.mubr.f32.mxu0 0.0
    %485 = vmatmul.mubr.f32.gmra.mxu0 %v199
    %v486 = vpop.f32.mrf.mxu0
    %v487 = vadd.f32 %v51, %v486
    %v488 = vpop.f32.mrf.mxu0
    %v489 = vadd.f32 %v51, %v488
    %490 = vmatprep.mubr.f32.mxu0 0.0
    %491 = vmatmul.mubr.f32.gmra.mxu0 %v202
    %v492 = vpop.f32.mrf.mxu0
    %v493 = vadd.f32 %v56, %v492
    %v494 = vpop.f32.mrf.mxu0
    %v495 = vadd.f32 %v56, %v494
    %496 = vmatprep.mubr.f32.mxu0 0.0
    %497 = vmatmul.mubr.f32.gmra.mxu0 %v205
    %v498 = vpop.f32.mrf.mxu0
    %v499 = vadd.f32 %v61, %v498
    %v500 = vpop.f32.mrf.mxu0
    %v501 = vadd.f32 %v61, %v500
    %502 = vmatprep.mubr.f32.mxu0 0.0
    %503 = vmatmul.mubr.f32.gmra.mxu0 %v208
    %v504 = vpop.f32.mrf.mxu0
    %v505 = vadd.f32 %v66, %v504
    %v506 = vpop.f32.mrf.mxu0
    %v507 = vadd.f32 %v66, %v506
    %508 = vmatprep.mubr.f32.mxu0 0.0
    %509 = vmatmul.mubr.f32.gmra.mxu0 %v211
    %v510 = vpop.f32.mrf.mxu0
    %v511 = vadd.f32 %v71, %v510
    %v512 = vpop.f32.mrf.mxu0
    %v513 = vadd.f32 %v71, %v512
    %514 = vmatprep.mubr.f32.mxu0 0.0
    %515 = vmatmul.mubr.f32.gmra.mxu0 %v214
    %v516 = vpop.f32.mrf.mxu0
    %v517 = vadd.f32 %v76, %v516
    %v518 = vpop.f32.mrf.mxu0
    %v519 = vadd.f32 %v76, %v518
    %520 = vdwg.mxu0
    %521 = vmatprep.subr.mxu0 0.0
    %522 = vmatpush1.xpose.msra.mxu0 %v358
    %523 = vmatprep.subr.mxu0 0.0
    %524 = vmatpush1.xpose.msra.mxu0 %v355
    %525 = vmatprep.subr.mxu0 0.0
    %526 = vmatpush1.xpose.msra.mxu0 %v352
    %527 = vmatprep.subr.mxu0 0.0
    %528 = vmatpush1.xpose.msra.mxu0 %v349
    %529 = vmatprep.subr.mxu0 0.0
    %530 = vmatpush1.xpose.msra.mxu0 %v346
    %531 = vmatprep.subr.mxu0 0.0
    %532 = vmatpush1.xpose.msra.mxu0 %v343
    %533 = vmatprep.subr.mxu0 0.0
    %534 = vmatpush1.xpose.msra.mxu0 %v340
    %535 = vmatprep.subr.mxu0 0.0
    %536 = vmatpush1.xpose.msra.mxu0 %v337
    %537 = vmatprep.subr.mxu0 0.0
    %538 = vmatpush1.xpose.msra.mxu0 %v334
    %539 = vmatprep.subr.mxu0 0.0
    %540 = vmatpush1.xpose.msra.mxu0 %v331
    %541 = vmatprep.subr.mxu0 0.0
    %542 = vmatpush1.xpose.msra.mxu0 %v328
    %543 = vmatprep.subr.mxu0 0.0
    %544 = vmatpush1.xpose.msra.mxu0 %v325
    %545 = vmatprep.subr.mxu0 0.0
    %546 = vmatpush1.xpose.msra.mxu0 %v322
    %547 = vmatprep.subr.mxu0 0.0
    %548 = vmatpush1.xpose.msra.mxu0 %v319
    %549 = vmatprep.subr.mxu0 0.0
    %550 = vmatpush1.xpose.msra.mxu0 %v316
    %551 = vmatprep.subr.mxu0 0.0
    %552 = vmatpush1.xpose.msra.mxu0 %v313
    %553 = vmatprep.subr.mxu0 0.0
    %554 = vmatpush2.xpose.msra.mxu0 %v406
    %555 = vmatprep.subr.mxu0 0.0
    %556 = vmatpush2.xpose.msra.mxu0 %v403
    %557 = vmatprep.subr.mxu0 0.0
    %558 = vmatpush2.xpose.msra.mxu0 %v400
    %559 = vmatprep.subr.mxu0 0.0
    %560 = vmatpush2.xpose.msra.mxu0 %v397
    %561 = vmatprep.subr.mxu0 0.0
    %562 = vmatpush2.xpose.msra.mxu0 %v394
    %563 = vmatprep.subr.mxu0 0.0
    %564 = vmatpush2.xpose.msra.mxu0 %v391
    %565 = vmatprep.subr.mxu0 0.0
    %566 = vmatpush2.xpose.msra.mxu0 %v388
    %567 = vmatprep.subr.mxu0 0.0
    %568 = vmatpush2.xpose.msra.mxu0 %v385
    %569 = vmatprep.subr.mxu0 0.0
    %570 = vmatpush2.xpose.msra.mxu0 %v382
    %571 = vmatprep.subr.mxu0 0.0
    %572 = vmatpush2.xpose.msra.mxu0 %v379
    %573 = vmatprep.subr.mxu0 0.0
    %574 = vmatpush2.xpose.msra.mxu0 %v376
    %575 = vmatprep.subr.mxu0 0.0
    %576 = vmatpush2.xpose.msra.mxu0 %v373
    %577 = vmatprep.subr.mxu0 0.0
    %578 = vmatpush2.xpose.msra.mxu0 %v370
    %579 = vmatprep.subr.mxu0 0.0
    %580 = vmatpush2.xpose.msra.mxu0 %v367
    %581 = vmatprep.subr.mxu0 0.0
    %582 = vmatpush2.xpose.msra.mxu0 %v364
    %583 = vmatprep.subr.mxu0 0.0
    %584 = vmatpush2.xpose.msra.mxu0 %v361
    %585 = vmatprep.mubr.f32.mxu0 0.0
    %586 = vmatmul.mubr.f32.gmra.mxu0 %v193
    %v587 = vpop.f32.mrf.mxu0
    %v588 = vadd.f32 %v41, %v587
    %v589 = vpop.f32.mrf.mxu0
    %v590 = vadd.f32 %v41, %v589
    %591 = vmatprep.mubr.f32.mxu0 0.0
    %592 = vmatmul.mubr.f32.gmra.mxu0 %v196
    %v593 = vpop.f32.mrf.mxu0
    %v594 = vadd.f32 %v46, %v593
    %v595 = vpop.f32.mrf.mxu0
    %v596 = vadd.f32 %v46, %v595
    %597 = vmatprep.mubr.f32.mxu0 0.0
    %598 = vmatmul.mubr.f32.gmra.mxu0 %v199
    %v599 = vpop.f32.mrf.mxu0
    %v600 = vadd.f32 %v51, %v599
    %v601 = vpop.f32.mrf.mxu0
    %v602 = vadd.f32 %v51, %v601
    %603 = vmatprep.mubr.f32.mxu0 0.0
    %604 = vmatmul.mubr.f32.gmra.mxu0 %v202
    %v605 = vpop.f32.mrf.mxu0
    %v606 = vadd.f32 %v56, %v605
    %v607 = vpop.f32.mrf.mxu0
    %v608 = vadd.f32 %v56, %v607
    %609 = vmatprep.mubr.f32.mxu0 0.0
    %610 = vmatmul.mubr.f32.gmra.mxu0 %v205
    %v611 = vpop.f32.mrf.mxu0
    %v612 = vadd.f32 %v61, %v611
    %v613 = vpop.f32.mrf.mxu0
    %v614 = vadd.f32 %v61, %v613
    %615 = vmatprep.mubr.f32.mxu0 0.0
    %616 = vmatmul.mubr.f32.gmra.mxu0 %v208
    %v617 = vpop.f32.mrf.mxu0
    %v618 = vadd.f32 %v66, %v617
    %v619 = vpop.f32.mrf.mxu0
    %v620 = vadd.f32 %v66, %v619
    %621 = vmatprep.mubr.f32.mxu0 0.0
    %622 = vmatmul.mubr.f32.gmra.mxu0 %v211
    %v623 = vpop.f32.mrf.mxu0
    %v624 = vadd.f32 %v71, %v623
    %v625 = vpop.f32.mrf.mxu0
    %v626 = vadd.f32 %v71, %v625
    %627 = vmatprep.mubr.f32.mxu0 0.0
    %628 = vmatmul.mubr.f32.gmra.mxu0 %v214
    %v629 = vpop.f32.mrf.mxu0
    %v630 = vadd.f32 %v76, %v629
    %v631 = vpop.f32.mrf.mxu0
    %v632 = vadd.f32 %v76, %v631
    %633 = vdwg.mxu0
    %v634 = vmax.f32 %v475, 0.0
    %v635 = vmax.f32 %v477, 0.0
    %v636 = vmax.f32 %v588, 0.0
    %v637 = vmax.f32 %v590, 0.0
    %v638 = vmax.f32 %v481, 0.0
    %v639 = vmax.f32 %v483, 0.0
    %v640 = vmax.f32 %v594, 0.0
    %v641 = vmax.f32 %v596, 0.0
    %v642 = vmax.f32 %v487, 0.0
    %v643 = vmax.f32 %v489, 0.0
    %v644 = vmax.f32 %v600, 0.0
    %v645 = vmax.f32 %v602, 0.0
    %v646 = vmax.f32 %v493, 0.0
    %v647 = vmax.f32 %v495, 0.0
    %v648 = vmax.f32 %v606, 0.0
    %v649 = vmax.f32 %v608, 0.0
    %v650 = vmax.f32 %v499, 0.0
    %v651 = vmax.f32 %v501, 0.0
    %v652 = vmax.f32 %v612, 0.0
    %v653 = vmax.f32 %v614, 0.0
    %v654 = vmax.f32 %v505, 0.0
    %v655 = vmax.f32 %v507, 0.0
    %v656 = vmax.f32 %v618, 0.0
    %v657 = vmax.f32 %v620, 0.0
    %v658 = vmax.f32 %v511, 0.0
    %v659 = vmax.f32 %v513, 0.0
    %v660 = vmax.f32 %v624, 0.0
    %v661 = vmax.f32 %v626, 0.0
    %v662 = vmax.f32 %v517, 0.0
    %v663 = vmax.f32 %v519, 0.0
    %v664 = vmax.f32 %v630, 0.0
    %v665 = vmax.f32 %v632, 0.0
    %v666 = vmul.f32 %v634, %v89
    %v667 = vmul.f32 %v635, %v89
    %v668 = vmul.f32 %v636, %v89
    %v669 = vmul.f32 %v637, %v89
    %v670 = vmul.f32 %v638, %v94
    %v671 = vmul.f32 %v639, %v94
    %v672 = vmul.f32 %v640, %v94
    %v673 = vmul.f32 %v641, %v94
    %v674 = vmul.f32 %v642, %v99
    %v675 = vmul.f32 %v643, %v99
    %v676 = vmul.f32 %v644, %v99
    %v677 = vmul.f32 %v645, %v99
    %v678 = vmul.f32 %v646, %v104
    %v679 = vmul.f32 %v647, %v104
    %v680 = vmul.f32 %v648, %v104
    %v681 = vmul.f32 %v649, %v104
    %v682 = vmul.f32 %v650, %v109
    %v683 = vmul.f32 %v651, %v109
    %v684 = vmul.f32 %v652, %v109
    %v685 = vmul.f32 %v653, %v109
    %v686 = vmul.f32 %v654, %v114
    %v687 = vmul.f32 %v655, %v114
    %v688 = vmul.f32 %v656, %v114
    %v689 = vmul.f32 %v657, %v114
    %v690 = vmul.f32 %v658, %v119
    %v691 = vmul.f32 %v659, %v119
    %v692 = vmul.f32 %v660, %v119
    %v693 = vmul.f32 %v661, %v119
    %v694 = vmul.f32 %v662, %v124
    %v695 = vmul.f32 %v663, %v124
    %v696 = vmul.f32 %v664, %v124
    %v697 = vmul.f32 %v665, %v124
    %v698 = vadd.f32 %v666, %v670
    %v699 = vadd.f32 %v698, %v674
    %v700 = vadd.f32 %v699, %v678
    %v701 = vadd.f32 %v700, %v682
    %v702 = vadd.f32 %v701, %v686
    %v703 = vadd.f32 %v702, %v690
    %v704 = vadd.f32 %v703, %v694
    %v705 = vrot.slane %v704, 4
    %v706 = vadd.f32 %v704, %v705
    %v707 = vrot.slane %v706, 2
    %v708 = vadd.f32 %v706, %v707
    %v709 = vrot.slane %v708, 1
    %v710 = vadd.f32 %v708, %v709
    %v711 = vadd.f32 %v667, %v671
    %v712 = vadd.f32 %v711, %v675
    %v713 = vadd.f32 %v712, %v679
    %v714 = vadd.f32 %v713, %v683
    %v715 = vadd.f32 %v714, %v687
    %v716 = vadd.f32 %v715, %v691
    %v717 = vadd.f32 %v716, %v695
    %v718 = vrot.slane %v717, 4
    %v719 = vadd.f32 %v717, %v718
    %v720 = vrot.slane %v719, 2
    %v721 = vadd.f32 %v719, %v720
    %v722 = vrot.slane %v721, 1
    %v723 = vadd.f32 %v721, %v722
    %v724 = vadd.f32 %v668, %v672
    %v725 = vadd.f32 %v724, %v676
    %v726 = vadd.f32 %v725, %v680
    %v727 = vadd.f32 %v726, %v684
    %v728 = vadd.f32 %v727, %v688
    %v729 = vadd.f32 %v728, %v692
    %v730 = vadd.f32 %v729, %v696
    %v731 = vrot.slane %v730, 4
    %v732 = vadd.f32 %v730, %v731
    %v733 = vrot.slane %v732, 2
    %v734 = vadd.f32 %v732, %v733
    %v735 = vrot.slane %v734, 1
    %v736 = vadd.f32 %v734, %v735
    %v737 = vadd.f32 %v669, %v673
    %v738 = vadd.f32 %v737, %v677
    %v739 = vadd.f32 %v738, %v681
    %v740 = vadd.f32 %v739, %v685
    %v741 = vadd.f32 %v740, %v689
    %v742 = vadd.f32 %v741, %v693
    %v743 = vadd.f32 %v742, %v697
    %v744 = vrot.slane %v743, 4
    %v745 = vadd.f32 %v743, %v744
    %v746 = vrot.slane %v745, 2
    %v747 = vadd.f32 %v745, %v746
    %v748 = vrot.slane %v747, 1
    %v749 = vadd.f32 %v747, %v748
    %v750 = vstv %s126
    %v751 = vadd.f32 %v710, %v750
    %v752 = vadd.f32 %v723, %v750
    %v753 = vadd.f32 %v736, %v750
    %v754 = vadd.f32 %v749, %v750
    %v759 = vcombine.low %v751, %v752
    %v760 = vcombine.low %v753, %v754
    %v762 = vunpack.c.l.s4 1966171168
    %v763 = vunpack.c.0.s8 %v762
    %v764 = vlaneseq
    %v765 = vshrl.u32 %v764, 7
    %v766 = vsub.s32 %v763, %v765
    %v767 = vrot.slane %v759, %v766
    %v769 = vunpack.c.l.s4 1966171168
    %v770 = vunpack.c.0.s8 %v769
    %v771 = vlaneseq
    %v772 = vshrl.u32 %v771, 7
    %v773 = vsub.s32 %v770, %v772
    %v774 = vrot.slane %v760, %v773
    %v775 = vcombine.low %v767, %v774
    %v777 = vunpack.c.l.s4 1966171168
    %v778 = vunpack.c.0.s8 %v777
    %v779 = vlaneseq
    %v780 = vshrl.u32 %v779, 7
    %v781 = vsub.s32 %v778, %v780
    %v782 = vrot.slane %v775, %v781
    %v784 = vlaneseq
    %vm785 = vcmp.ge.s32.totalorder %v784, 0
    %vm786 = vcmp.lt.s32.totalorder %v784, 512
    %vm787 = vmand %vm785, %vm786
    %788 = vst.msk [vmem:[#allocation3] sm:$0xf] %vm787, %v782
    // Predicated region
    $region22: #{tpu_custom_call.1} parent=1 // pred_check
      _
    $region23: #{tpu_custom_call.1} parent=1 // pred_check_branch
      %790 = sbr.rel (0) target = $region25
    $region24: #{tpu_custom_call.1} parent=1 // pred_region
      %s792 = ssub.s32 64, 64
      %793 = vsyncadd [#allocation4], %s792
      %s795 = sshll.u32 [#allocation3], 4
      %s796 = int_to_ptr.vmem [resolvable:$true] %s795
      %798 = dma.vmem_to_hbm [thread:$0]  %s796, 64, %s5, [#allocation4]
    $region25: #{tpu_custom_call.1} parent=1 // pred_fallthru
      _
    // Predicated region
    $region26: #{tpu_custom_call.1} parent=1 // pred_check
      _
    $region27: #{tpu_custom_call.1} parent=1 // pred_check_branch
      %800 = sbr.rel (0) target = $region29
    $region28: #{tpu_custom_call.1} parent=1 // pred_region
      %801 = dma.done [#allocation4], 64
    $region29: #{tpu_custom_call.1} parent=1 // pred_fallthru
      _
    %802 = vsyncpa [#allocation4], 1

</llo_original>
